<compile_context>
chip_gen: v6e
topology: v6e:2x2x1
jax: 0.10.0
libtpu: 0.0.40
codegen_flags: <defaults>
</compile_context>

<pallas_src>
import math

import jax
import jax.numpy as jnp
from jax.experimental import pallas as pl
from jax.experimental.pallas import tpu as pltpu


def _attbilstm_kernel(xgf_ref, xgb_ref, whf_ref, whb_ref, attw_ref,
                      fcw_ref, fcb_ref, out_ref, hf_scr, hb_scr):
    S, TN, R4 = xgf_ref.shape
    R = R4 // 4
    R3 = 3 * R

    wf = whf_ref[...]                      # (R, 4R) bf16, columns [i|f|o|g]
    wb = whb_ref[...]

    def step(j, carry):
        hf, cf, hb, cb = carry             # each (TN, R) f32
        # Two per-direction fused-gate matmuls, back-to-back (independent chains).
        gf = jnp.dot(hf.astype(wf.dtype), wf,
                     preferred_element_type=jnp.float32) + xgf_ref[j]
        gb = jnp.dot(hb.astype(wb.dtype), wb,
                     preferred_element_type=jnp.float32) + xgb_ref[j]
        # Gate columns [i | f | o | g]: one sigmoid over 3R + one tanh over R per dir.
        sf = jax.nn.sigmoid(gf[:, :R3])
        sb = jax.nn.sigmoid(gb[:, :R3])
        ggf = jnp.tanh(gf[:, R3:])
        ggb = jnp.tanh(gb[:, R3:])
        cf = sf[:, R:2 * R] * cf + sf[:, :R] * ggf
        cb = sb[:, R:2 * R] * cb + sb[:, :R] * ggb
        hf = sf[:, 2 * R:] * jnp.tanh(cf)
        hb = sb[:, 2 * R:] * jnp.tanh(cb)
        hf_scr[j] = hf                     # forward output at time j
        hb_scr[S - 1 - j] = hb             # backward output aligned to time S-1-j
        return hf, cf, hb, cb

    z = jnp.zeros((TN, R), jnp.float32)
    unroll = True if S <= 8 else 4         # partial unroll for long serial chains
    jax.lax.fori_loop(0, S, step, (z, z, z, z), unroll=unroll)

    # ---- H[t] = h_fwd[t] + h_bwd[t]: one bulk add over the resident scratches ----
    H = hf_scr[...] + hb_scr[...]                                       # (S, TN, R)

    # ---- attention over the recurrence axis + classifier ----
    att = jnp.sum(jnp.tanh(H) * attw_ref[...], axis=-1, keepdims=True)  # (S, TN, 1)
    att = att - jnp.max(att, axis=0, keepdims=True)
    ez = jnp.exp(att)
    alpha = ez * pl.reciprocal(jnp.sum(ez, axis=0, keepdims=True), approx=True)
    r = jnp.sum(H * alpha, axis=0)                                      # (TN, R)
    hv = jnp.tanh(r)
    out_ref[...] = (jnp.dot(hv.astype(fcw_ref.dtype), fcw_ref[...],
                            preferred_element_type=jnp.float32)
                    + fcb_ref[...])                                     # (TN, CP)


def init_params(key, vocab_size, emb_size, rnn_size, n_classes):
    """PyTorch-layout parameters (gate order i, f, g, o)."""
    ks = jax.random.split(key, 13)
    kinv = 1.0 / math.sqrt(rnn_size)

    def u(k, shape, a):
        return jax.random.uniform(k, shape, jnp.float32, -a, a)

    return dict(
        embedding=u(ks[0], (vocab_size, emb_size), 0.1),
        wih_f=u(ks[1], (4 * rnn_size, emb_size), kinv),
        whh_f=u(ks[2], (4 * rnn_size, rnn_size), kinv),
        bih_f=u(ks[3], (4 * rnn_size,), kinv),
        bhh_f=u(ks[4], (4 * rnn_size,), kinv),
        wih_b=u(ks[5], (4 * rnn_size, emb_size), kinv),
        whh_b=u(ks[6], (4 * rnn_size, rnn_size), kinv),
        bih_b=u(ks[7], (4 * rnn_size,), kinv),
        bhh_b=u(ks[8], (4 * rnn_size,), kinv),
        attw=u(ks[9], (1, rnn_size), kinv),
        attb=u(ks[10], (1,), kinv),
        fcw=u(ks[11], (n_classes, rnn_size), kinv),
        fcb=u(ks[12], (n_classes,), kinv),
    )


_GATE_ORDER = ("i", "f", "o", "g")    # sigmoid on first 3R columns, tanh on last R


def _fuse_gate_cols(w, R):
    """(4R, X) PyTorch rows [i,f,g,o] -> (X, 4R) columns ordered [i,f,o,g]."""
    blk = {"i": w[0:R], "f": w[R:2 * R], "g": w[2 * R:3 * R], "o": w[3 * R:4 * R]}
    return jnp.concatenate([blk[k].T for k in _GATE_ORDER], axis=1)


def _fuse_gate_bias(b, R):
    blk = {"i": b[0:R], "f": b[R:2 * R], "g": b[2 * R:3 * R], "o": b[3 * R:4 * R]}
    return jnp.concatenate([blk[k] for k in _GATE_ORDER])


def _padded_bytes(shape, itemsize):
    """Bytes of a VMEM buffer with lane (128) / sublane (8 or 16) padding."""
    s = list(shape)
    s[-1] = -(-s[-1] // 128) * 128
    if len(s) >= 2:
        sub = 8 * (4 // itemsize)
        s[-2] = -(-s[-2] // sub) * sub
    n = itemsize
    for d in s:
        n *= d
    return n


@jax.jit
def att_bilstm_forward(text, params):
    # Embedding lookup (gather) kept as plain-JAX glue.
    x = jnp.take(params["embedding"], text, axis=0).astype(jnp.float32)  # (S=batch, N=word_pad_len, E)
    S, N, E = x.shape
    R = params["whh_f"].shape[1]
    C = params["fcw"].shape[0]
    CP = 128 * ((C + 127) // 128)            # lane-dense padded classifier width

    # ---- wrapper-side weight packing (layout plumbing is free here) ----
    wxf = _fuse_gate_cols(params["wih_f"], R)                          # (E, 4R)
    wxb = _fuse_gate_cols(params["wih_b"], R)
    bxf = _fuse_gate_bias(params["bih_f"] + params["bhh_f"], R)        # (4R,)
    bxb = _fuse_gate_bias(params["bih_b"] + params["bhh_b"], R)
    whf = _fuse_gate_cols(params["whh_f"], R).astype(jnp.bfloat16)     # (R, 4R)
    whb = _fuse_gate_cols(params["whh_b"], R).astype(jnp.bfloat16)
    attw = params["attw"].reshape(1, 1, R)
    fcw_pad = jnp.zeros((R, CP), jnp.bfloat16).at[:, :C].set(
        params["fcw"].T.astype(jnp.bfloat16))
    fcb_pad = jnp.zeros((1, CP), jnp.float32).at[:, :C].set(
        params["fcb"].reshape(1, C))

    # ---- input projection hoisted out of the kernel (one big XLA GEMM) ----
    xg_f = jnp.einsum("sne,eg->sng", x, wxf) + bxf                     # (S, N, 4R)
    xg_b = jnp.einsum("sne,eg->sng", x, wxb) + bxb
    xg_b = xg_b[::-1]             # time-reversed: kernel index j == original time S-1-j

    # ---- tiling over the independent word axis N (parallel / megacore axis) ----
    TN = 128 if N >= 128 else max(8, -(-N // 8) * 8)

    def vmem_bytes(tn):
        dbl = [((S, tn, 4 * R), 4), ((S, tn, 4 * R), 4),       # xg_f / xg_b blocks
               ((R, 4 * R), 2), ((R, 4 * R), 2),                # whh (bf16)
               ((1, 1, R), 4), ((R, CP), 2), ((1, CP), 4),      # attw / fc
               ((tn, CP), 4)]                                   # out block
        scr = [((S, tn, R), 4), ((S, tn, R), 4)]                # hf / hb scratch
        return (sum(2 * _padded_bytes(s, i) for s, i in dbl)    # double-buffered
                + sum(_padded_bytes(s, i) for s, i in scr))

    # Keep the padded working set well under v7x's 64 MiB physical VMEM.
    while TN > 64 and vmem_bytes(TN) > 40 * 2 ** 20:
        TN //= 2
    Np = -(-N // TN) * TN
    grid = (Np // TN,)
    vmem_limit = int(min(max(int(vmem_bytes(TN) * 1.4), 8 * 2 ** 20), 64 * 2 ** 20))

    if Np != N:
        pad = ((0, 0), (0, Np - N), (0, 0))
        xg_f = jnp.pad(xg_f, pad)
        xg_b = jnp.pad(xg_b, pad)

    flops = int(2 * 2 * S * Np * R * 4 * R        # recurrent gate matmuls (both dirs)
                + 2 * Np * R * CP                 # classifier
                + 24 * S * Np * R)                # cell updates / attention elementwise
    transcendentals = int(10 * S * Np * R + S * Np * (R + 1) + Np * R)
    bytes_accessed = int(4 * (2 * S * Np * 4 * R + 2 * Np * CP)
                         + 2 * (2 * R * 4 * R + R * CP))

    out = pl.pallas_call(
        _attbilstm_kernel,
        out_shape=jax.ShapeDtypeStruct((Np, CP), jnp.float32),
        grid=grid,
        in_specs=[
            pl.BlockSpec((S, TN, 4 * R), lambda n: (0, n, 0)),      # xg_f
            pl.BlockSpec((S, TN, 4 * R), lambda n: (0, n, 0)),      # xg_b (time-reversed)
            pl.BlockSpec((R, 4 * R), lambda n: (0, 0)),             # whh_f (bf16)
            pl.BlockSpec((R, 4 * R), lambda n: (0, 0)),             # whh_b (bf16)
            pl.BlockSpec((1, 1, R), lambda n: (0, 0, 0)),           # attw
            pl.BlockSpec((R, CP), lambda n: (0, 0)),                # fcw (bf16, padded)
            pl.BlockSpec((1, CP), lambda n: (0, 0)),                # fcb (padded)
        ],
        out_specs=pl.BlockSpec((TN, CP), lambda n: (n, 0)),
        scratch_shapes=[
            pltpu.VMEM((S, TN, R), jnp.float32),    # h_fwd outputs, time-aligned
            pltpu.VMEM((S, TN, R), jnp.float32),    # h_bwd outputs, time-aligned
        ],
        compiler_params=pltpu.CompilerParams(
            dimension_semantics=("parallel",),
            vmem_limit_bytes=vmem_limit,
        ),
        cost_estimate=pl.CostEstimate(flops=flops,
                                      transcendentals=transcendentals,
                                      bytes_accessed=bytes_accessed),
    )(xg_f, xg_b, whf, whb, attw, fcw_pad, fcb_pad)

    return out[:N, :C]


def ref_forward(text, params):
    """Pure-JAX reference mirroring the literal PyTorch forward semantics."""
    x = jnp.take(params["embedding"], text, axis=0).astype(jnp.float32)  # (S, N, E)
    S, N, _E = x.shape
    R = params["whh_f"].shape[1]

    def run(wih, whh, b, xs):
        def step(carry, xt):
            h, c = carry
            gates = xt @ wih.T + h @ whh.T + b
            i, f, g, o = jnp.split(gates, 4, axis=-1)
            i = jax.nn.sigmoid(i)
            f = jax.nn.sigmoid(f)
            g = jnp.tanh(g)
            o = jax.nn.sigmoid(o)
            c = f * c + i * g
            h = o * jnp.tanh(c)
            return (h, c), h

        init = (jnp.zeros((N, R), jnp.float32), jnp.zeros((N, R), jnp.float32))
        _, hs = jax.lax.scan(step, init, xs)
        return hs

    hf = run(params["wih_f"], params["whh_f"], params["bih_f"] + params["bhh_f"], x)
    hb = run(params["wih_b"], params["whh_b"], params["bih_b"] + params["bhh_b"], x[::-1])[::-1]
    H = hf + hb
    M = jnp.tanh(H)
    logits = jnp.einsum("snr,r->sn", M, params["attw"][0]) + params["attb"][0]
    alpha = jax.nn.softmax(logits, axis=0)               # softmax over the recurrence axis
    r = jnp.sum(H * alpha[:, :, None], axis=0)           # (N, R)
    hv = jnp.tanh(r)
    return hv @ params["fcw"].T + params["fcb"][None, :]


if __name__ == "__main__":
    key = jax.random.PRNGKey(0)
    batch, word_pad_len = 4, 8
    vocab_size, emb_size, rnn_size, n_classes = 50, 32, 16, 4

    pkey, tkey = jax.random.split(key)
    params = init_params(pkey, vocab_size, emb_size, rnn_size, n_classes)
    text = jax.random.randint(tkey, (batch, word_pad_len), 0, vocab_size, dtype=jnp.int32)

    scores = att_bilstm_forward(text, params)
    scores = jax.block_until_ready(scores)
    assert scores.shape == (word_pad_len, n_classes)
    assert scores.dtype == jnp.float32

    ref = ref_forward(text, params)
    assert jnp.allclose(scores, ref, atol=2e-2, rtol=2e-2), (scores, ref)

    print("KERNEL_OK")
</pallas_src>

<mosaic_0001>
module attributes {stable_mosaic.version = 11 : i64} {
  func.func @_attbilstm_kernel(%arg0: i32, %arg1: memref<4x8x64xf32, #tpu.memory_space<vmem>>, %arg2: memref<4x8x64xf32, #tpu.memory_space<vmem>>, %arg3: memref<16x64xbf16, #tpu.memory_space<vmem>>, %arg4: memref<16x64xbf16, #tpu.memory_space<vmem>>, %arg5: memref<1x1x16xf32, #tpu.memory_space<vmem>>, %arg6: memref<16x128xbf16, #tpu.memory_space<vmem>>, %arg7: memref<1x128xf32, #tpu.memory_space<vmem>>, %arg8: memref<8x128xf32, #tpu.memory_space<vmem>>, %arg9: memref<4x8x16xf32, #tpu.memory_space<vmem>>, %arg10: memref<4x8x16xf32, #tpu.memory_space<vmem>>) attributes {dimension_semantics = [#tpu.dimension_semantics<parallel>], iteration_bounds = array<i64: 1>, scalar_prefetch = 0 : i64, scratch_operands = 2 : i64, tpu.core_type = #tpu.core_type<tc>, window_params = [{transform_indices = @transform_0, window_bounds = array<i64: 4, 8, 64>}, {transform_indices = @transform_1, window_bounds = array<i64: 4, 8, 64>}, {pipeline_mode = #tpu.pipeline_mode<synchronous>, transform_indices = @transform_2, window_bounds = array<i64: 16, 64>}, {pipeline_mode = #tpu.pipeline_mode<synchronous>, transform_indices = @transform_3, window_bounds = array<i64: 16, 64>}, {pipeline_mode = #tpu.pipeline_mode<synchronous>, transform_indices = @transform_4, window_bounds = array<i64: 1, 1, 16>}, {pipeline_mode = #tpu.pipeline_mode<synchronous>, transform_indices = @transform_5, window_bounds = array<i64: 16, 128>}, {pipeline_mode = #tpu.pipeline_mode<synchronous>, transform_indices = @transform_6, window_bounds = array<i64: 1, 128>}, {transform_indices = @transform_7, window_bounds = array<i64: 8, 128>}]} {
    %c0 = arith.constant 0 : index
    %c0_0 = arith.constant 0 : index
    %0 = vector.load %arg3[%c0, %c0_0] : memref<16x64xbf16, #tpu.memory_space<vmem>>, vector<16x64xbf16>
    %c0_1 = arith.constant 0 : index
    %c0_2 = arith.constant 0 : index
    %1 = vector.load %arg4[%c0_1, %c0_2] : memref<16x64xbf16, #tpu.memory_space<vmem>>, vector<16x64xbf16>
    %cst = arith.constant 0.000000e+00 : f32
    %2 = vector.broadcast %cst : f32 to vector<8x16xf32>
    %c0_i32 = arith.constant 0 : i32
    %3 = arith.truncf %2 : vector<8x16xf32> to vector<8x16xbf16>
    %cst_3 = arith.constant dense<0.000000e+00> : vector<8x64xf32>
    %4 = tpu.matmul %3, %0, %cst_3 {dimension_numbers = #tpu.dot_dimension_numbers<[1], [0], [0], [1], [0, 0, 1, 1], [], []>} : vector<8x16xbf16>, vector<16x64xbf16>, vector<8x64xf32> -> vector<8x64xf32>
    %5 = arith.index_cast %c0_i32 : i32 to index
    %c0_4 = arith.constant 0 : index
    %c0_5 = arith.constant 0 : index
    %6 = vector.load %arg1[%5, %c0_4, %c0_5] : memref<4x8x64xf32, #tpu.memory_space<vmem>>, vector<1x8x64xf32>
    %7 = vector.shape_cast %6 : vector<1x8x64xf32> to vector<8x64xf32>
    %8 = arith.addf %4, %7 : vector<8x64xf32>
    %9 = arith.truncf %2 : vector<8x16xf32> to vector<8x16xbf16>
    %cst_6 = arith.constant dense<0.000000e+00> : vector<8x64xf32>
    %10 = tpu.matmul %9, %1, %cst_6 {dimension_numbers = #tpu.dot_dimension_numbers<[1], [0], [0], [1], [0, 0, 1, 1], [], []>} : vector<8x16xbf16>, vector<16x64xbf16>, vector<8x64xf32> -> vector<8x64xf32>
    %11 = arith.index_cast %c0_i32 : i32 to index
    %c0_7 = arith.constant 0 : index
    %c0_8 = arith.constant 0 : index
    %12 = vector.load %arg2[%11, %c0_7, %c0_8] : memref<4x8x64xf32, #tpu.memory_space<vmem>>, vector<1x8x64xf32>
    %13 = vector.shape_cast %12 : vector<1x8x64xf32> to vector<8x64xf32>
    %14 = arith.addf %10, %13 : vector<8x64xf32>
    %15 = vector.extract_strided_slice %8 {offsets = [0, 0], sizes = [8, 48], strides = [1, 1]} : vector<8x64xf32> to vector<8x48xf32>
    %16 = arith.negf %15 : vector<8x48xf32>
    %17 = math.exp %16 : vector<8x48xf32>
    %cst_9 = arith.constant 1.000000e+00 : f32
    %18 = vector.broadcast %cst_9 : f32 to vector<8x48xf32>
    %19 = arith.addf %18, %17 : vector<8x48xf32>
    %20 = arith.divf %18, %19 : vector<8x48xf32>
    %21 = vector.extract_strided_slice %14 {offsets = [0, 0], sizes = [8, 48], strides = [1, 1]} : vector<8x64xf32> to vector<8x48xf32>
    %22 = arith.negf %21 : vector<8x48xf32>
    %23 = math.exp %22 : vector<8x48xf32>
    %cst_10 = arith.constant 1.000000e+00 : f32
    %24 = vector.broadcast %cst_10 : f32 to vector<8x48xf32>
    %25 = arith.addf %24, %23 : vector<8x48xf32>
    %26 = arith.divf %24, %25 : vector<8x48xf32>
    %27 = vector.extract_strided_slice %8 {offsets = [0, 48], sizes = [8, 16], strides = [1, 1]} : vector<8x64xf32> to vector<8x16xf32>
    %28 = math.tanh %27 : vector<8x16xf32>
    %29 = vector.extract_strided_slice %14 {offsets = [0, 48], sizes = [8, 16], strides = [1, 1]} : vector<8x64xf32> to vector<8x16xf32>
    %30 = math.tanh %29 : vector<8x16xf32>
    %31 = vector.extract_strided_slice %20 {offsets = [0, 16], sizes = [8, 16], strides = [1, 1]} : vector<8x48xf32> to vector<8x16xf32>
    %32 = arith.mulf %31, %2 : vector<8x16xf32>
    %33 = vector.extract_strided_slice %20 {offsets = [0, 0], sizes = [8, 16], strides = [1, 1]} : vector<8x48xf32> to vector<8x16xf32>
    %34 = arith.mulf %33, %28 : vector<8x16xf32>
    %35 = arith.addf %32, %34 : vector<8x16xf32>
    %36 = vector.extract_strided_slice %26 {offsets = [0, 16], sizes = [8, 16], strides = [1, 1]} : vector<8x48xf32> to vector<8x16xf32>
    %37 = arith.mulf %36, %2 : vector<8x16xf32>
    %38 = vector.extract_strided_slice %26 {offsets = [0, 0], sizes = [8, 16], strides = [1, 1]} : vector<8x48xf32> to vector<8x16xf32>
    %39 = arith.mulf %38, %30 : vector<8x16xf32>
    %40 = arith.addf %37, %39 : vector<8x16xf32>
    %41 = vector.extract_strided_slice %20 {offsets = [0, 32], sizes = [8, 16], strides = [1, 1]} : vector<8x48xf32> to vector<8x16xf32>
    %42 = math.tanh %35 : vector<8x16xf32>
    %43 = arith.mulf %41, %42 : vector<8x16xf32>
    %44 = vector.extract_strided_slice %26 {offsets = [0, 32], sizes = [8, 16], strides = [1, 1]} : vector<8x48xf32> to vector<8x16xf32>
    %45 = math.tanh %40 : vector<8x16xf32>
    %46 = arith.mulf %44, %45 : vector<8x16xf32>
    %47 = arith.index_cast %c0_i32 : i32 to index
    %c0_11 = arith.constant 0 : index
    %c0_12 = arith.constant 0 : index
    %48 = vector.load %arg9[%47, %c0_11, %c0_12] : memref<4x8x16xf32, #tpu.memory_space<vmem>>, vector<1x8x16xf32>
    %49 = vector.shape_cast %48 : vector<1x8x16xf32> to vector<8x16xf32>
    %50 = vector.shape_cast %43 : vector<8x16xf32> to vector<1x8x16xf32>
    tpu.vector_store %arg9[%47, %c0_11, %c0_12], %50 {strides = array<i32>} : memref<4x8x16xf32, #tpu.memory_space<vmem>>, vector<1x8x16xf32>,
    %c3_i32 = arith.constant 3 : i32
    %51 = arith.subi %c3_i32, %c0_i32 : i32
    %52 = arith.index_cast %51 : i32 to index
    %c0_13 = arith.constant 0 : index
    %c0_14 = arith.constant 0 : index
    %53 = vector.load %arg10[%52, %c0_13, %c0_14] : memref<4x8x16xf32, #tpu.memory_space<vmem>>, vector<1x8x16xf32>
    %54 = vector.shape_cast %53 : vector<1x8x16xf32> to vector<8x16xf32>
    %55 = vector.shape_cast %46 : vector<8x16xf32> to vector<1x8x16xf32>
    tpu.vector_store %arg10[%52, %c0_13, %c0_14], %55 {strides = array<i32>} : memref<4x8x16xf32, #tpu.memory_space<vmem>>, vector<1x8x16xf32>,
    %c1_i32 = arith.constant 1 : i32
    %56 = arith.truncf %43 : vector<8x16xf32> to vector<8x16xbf16>
    %cst_15 = arith.constant dense<0.000000e+00> : vector<8x64xf32>
    %57 = tpu.matmul %56, %0, %cst_15 {dimension_numbers = #tpu.dot_dimension_numbers<[1], [0], [0], [1], [0, 0, 1, 1], [], []>} : vector<8x16xbf16>, vector<16x64xbf16>, vector<8x64xf32> -> vector<8x64xf32>
    %58 = arith.index_cast %c1_i32 : i32 to index
    %c0_16 = arith.constant 0 : index
    %c0_17 = arith.constant 0 : index
    %59 = vector.load %arg1[%58, %c0_16, %c0_17] : memref<4x8x64xf32, #tpu.memory_space<vmem>>, vector<1x8x64xf32>
    %60 = vector.shape_cast %59 : vector<1x8x64xf32> to vector<8x64xf32>
    %61 = arith.addf %57, %60 : vector<8x64xf32>
    %62 = arith.truncf %46 : vector<8x16xf32> to vector<8x16xbf16>
    %cst_18 = arith.constant dense<0.000000e+00> : vector<8x64xf32>
    %63 = tpu.matmul %62, %1, %cst_18 {dimension_numbers = #tpu.dot_dimension_numbers<[1], [0], [0], [1], [0, 0, 1, 1], [], []>} : vector<8x16xbf16>, vector<16x64xbf16>, vector<8x64xf32> -> vector<8x64xf32>
    %64 = arith.index_cast %c1_i32 : i32 to index
    %c0_19 = arith.constant 0 : index
    %c0_20 = arith.constant 0 : index
    %65 = vector.load %arg2[%64, %c0_19, %c0_20] : memref<4x8x64xf32, #tpu.memory_space<vmem>>, vector<1x8x64xf32>
    %66 = vector.shape_cast %65 : vector<1x8x64xf32> to vector<8x64xf32>
    %67 = arith.addf %63, %66 : vector<8x64xf32>
    %68 = vector.extract_strided_slice %61 {offsets = [0, 0], sizes = [8, 48], strides = [1, 1]} : vector<8x64xf32> to vector<8x48xf32>
    %69 = arith.negf %68 : vector<8x48xf32>
    %70 = math.exp %69 : vector<8x48xf32>
    %cst_21 = arith.constant 1.000000e+00 : f32
    %71 = vector.broadcast %cst_21 : f32 to vector<8x48xf32>
    %72 = arith.addf %71, %70 : vector<8x48xf32>
    %73 = arith.divf %71, %72 : vector<8x48xf32>
    %74 = vector.extract_strided_slice %67 {offsets = [0, 0], sizes = [8, 48], strides = [1, 1]} : vector<8x64xf32> to vector<8x48xf32>
    %75 = arith.negf %74 : vector<8x48xf32>
    %76 = math.exp %75 : vector<8x48xf32>
    %cst_22 = arith.constant 1.000000e+00 : f32
    %77 = vector.broadcast %cst_22 : f32 to vector<8x48xf32>
    %78 = arith.addf %77, %76 : vector<8x48xf32>
    %79 = arith.divf %77, %78 : vector<8x48xf32>
    %80 = vector.extract_strided_slice %61 {offsets = [0, 48], sizes = [8, 16], strides = [1, 1]} : vector<8x64xf32> to vector<8x16xf32>
    %81 = math.tanh %80 : vector<8x16xf32>
    %82 = vector.extract_strided_slice %67 {offsets = [0, 48], sizes = [8, 16], strides = [1, 1]} : vector<8x64xf32> to vector<8x16xf32>
    %83 = math.tanh %82 : vector<8x16xf32>
    %84 = vector.extract_strided_slice %73 {offsets = [0, 16], sizes = [8, 16], strides = [1, 1]} : vector<8x48xf32> to vector<8x16xf32>
    %85 = arith.mulf %84, %35 : vector<8x16xf32>
    %86 = vector.extract_strided_slice %73 {offsets = [0, 0], sizes = [8, 16], strides = [1, 1]} : vector<8x48xf32> to vector<8x16xf32>
    %87 = arith.mulf %86, %81 : vector<8x16xf32>
    %88 = arith.addf %85, %87 : vector<8x16xf32>
    %89 = vector.extract_strided_slice %79 {offsets = [0, 16], sizes = [8, 16], strides = [1, 1]} : vector<8x48xf32> to vector<8x16xf32>
    %90 = arith.mulf %89, %40 : vector<8x16xf32>
    %91 = vector.extract_strided_slice %79 {offsets = [0, 0], sizes = [8, 16], strides = [1, 1]} : vector<8x48xf32> to vector<8x16xf32>
    %92 = arith.mulf %91, %83 : vector<8x16xf32>
    %93 = arith.addf %90, %92 : vector<8x16xf32>
    %94 = vector.extract_strided_slice %73 {offsets = [0, 32], sizes = [8, 16], strides = [1, 1]} : vector<8x48xf32> to vector<8x16xf32>
    %95 = math.tanh %88 : vector<8x16xf32>
    %96 = arith.mulf %94, %95 : vector<8x16xf32>
    %97 = vector.extract_strided_slice %79 {offsets = [0, 32], sizes = [8, 16], strides = [1, 1]} : vector<8x48xf32> to vector<8x16xf32>
    %98 = math.tanh %93 : vector<8x16xf32>
    %99 = arith.mulf %97, %98 : vector<8x16xf32>
    %100 = arith.index_cast %c1_i32 : i32 to index
    %c0_23 = arith.constant 0 : index
    %c0_24 = arith.constant 0 : index
    %101 = vector.load %arg9[%100, %c0_23, %c0_24] : memref<4x8x16xf32, #tpu.memory_space<vmem>>, vector<1x8x16xf32>
    %102 = vector.shape_cast %101 : vector<1x8x16xf32> to vector<8x16xf32>
    %103 = vector.shape_cast %96 : vector<8x16xf32> to vector<1x8x16xf32>
    tpu.vector_store %arg9[%100, %c0_23, %c0_24], %103 {strides = array<i32>} : memref<4x8x16xf32, #tpu.memory_space<vmem>>, vector<1x8x16xf32>,
    %c3_i32_25 = arith.constant 3 : i32
    %104 = arith.subi %c3_i32_25, %c1_i32 : i32
    %105 = arith.index_cast %104 : i32 to index
    %c0_26 = arith.constant 0 : index
    %c0_27 = arith.constant 0 : index
    %106 = vector.load %arg10[%105, %c0_26, %c0_27] : memref<4x8x16xf32, #tpu.memory_space<vmem>>, vector<1x8x16xf32>
    %107 = vector.shape_cast %106 : vector<1x8x16xf32> to vector<8x16xf32>
    %108 = vector.shape_cast %99 : vector<8x16xf32> to vector<1x8x16xf32>
    tpu.vector_store %arg10[%105, %c0_26, %c0_27], %108 {strides = array<i32>} : memref<4x8x16xf32, #tpu.memory_space<vmem>>, vector<1x8x16xf32>,
    %c2_i32 = arith.constant 2 : i32
    %109 = arith.truncf %96 : vector<8x16xf32> to vector<8x16xbf16>
    %cst_28 = arith.constant dense<0.000000e+00> : vector<8x64xf32>
    %110 = tpu.matmul %109, %0, %cst_28 {dimension_numbers = #tpu.dot_dimension_numbers<[1], [0], [0], [1], [0, 0, 1, 1], [], []>} : vector<8x16xbf16>, vector<16x64xbf16>, vector<8x64xf32> -> vector<8x64xf32>
    %111 = arith.index_cast %c2_i32 : i32 to index
    %c0_29 = arith.constant 0 : index
    %c0_30 = arith.constant 0 : index
    %112 = vector.load %arg1[%111, %c0_29, %c0_30] : memref<4x8x64xf32, #tpu.memory_space<vmem>>, vector<1x8x64xf32>
    %113 = vector.shape_cast %112 : vector<1x8x64xf32> to vector<8x64xf32>
    %114 = arith.addf %110, %113 : vector<8x64xf32>
    %115 = arith.truncf %99 : vector<8x16xf32> to vector<8x16xbf16>
    %cst_31 = arith.constant dense<0.000000e+00> : vector<8x64xf32>
    %116 = tpu.matmul %115, %1, %cst_31 {dimension_numbers = #tpu.dot_dimension_numbers<[1], [0], [0], [1], [0, 0, 1, 1], [], []>} : vector<8x16xbf16>, vector<16x64xbf16>, vector<8x64xf32> -> vector<8x64xf32>
    %117 = arith.index_cast %c2_i32 : i32 to index
    %c0_32 = arith.constant 0 : index
    %c0_33 = arith.constant 0 : index
    %118 = vector.load %arg2[%117, %c0_32, %c0_33] : memref<4x8x64xf32, #tpu.memory_space<vmem>>, vector<1x8x64xf32>
    %119 = vector.shape_cast %118 : vector<1x8x64xf32> to vector<8x64xf32>
    %120 = arith.addf %116, %119 : vector<8x64xf32>
    %121 = vector.extract_strided_slice %114 {offsets = [0, 0], sizes = [8, 48], strides = [1, 1]} : vector<8x64xf32> to vector<8x48xf32>
    %122 = arith.negf %121 : vector<8x48xf32>
    %123 = math.exp %122 : vector<8x48xf32>
    %cst_34 = arith.constant 1.000000e+00 : f32
    %124 = vector.broadcast %cst_34 : f32 to vector<8x48xf32>
    %125 = arith.addf %124, %123 : vector<8x48xf32>
    %126 = arith.divf %124, %125 : vector<8x48xf32>
    %127 = vector.extract_strided_slice %120 {offsets = [0, 0], sizes = [8, 48], strides = [1, 1]} : vector<8x64xf32> to vector<8x48xf32>
    %128 = arith.negf %127 : vector<8x48xf32>
    %129 = math.exp %128 : vector<8x48xf32>
    %cst_35 = arith.constant 1.000000e+00 : f32
    %130 = vector.broadcast %cst_35 : f32 to vector<8x48xf32>
    %131 = arith.addf %130, %129 : vector<8x48xf32>
    %132 = arith.divf %130, %131 : vector<8x48xf32>
    %133 = vector.extract_strided_slice %114 {offsets = [0, 48], sizes = [8, 16], strides = [1, 1]} : vector<8x64xf32> to vector<8x16xf32>
    %134 = math.tanh %133 : vector<8x16xf32>
    %135 = vector.extract_strided_slice %120 {offsets = [0, 48], sizes = [8, 16], strides = [1, 1]} : vector<8x64xf32> to vector<8x16xf32>
    %136 = math.tanh %135 : vector<8x16xf32>
    %137 = vector.extract_strided_slice %126 {offsets = [0, 16], sizes = [8, 16], strides = [1, 1]} : vector<8x48xf32> to vector<8x16xf32>
    %138 = arith.mulf %137, %88 : vector<8x16xf32>
    %139 = vector.extract_strided_slice %126 {offsets = [0, 0], sizes = [8, 16], strides = [1, 1]} : vector<8x48xf32> to vector<8x16xf32>
    %140 = arith.mulf %139, %134 : vector<8x16xf32>
    %141 = arith.addf %138, %140 : vector<8x16xf32>
    %142 = vector.extract_strided_slice %132 {offsets = [0, 16], sizes = [8, 16], strides = [1, 1]} : vector<8x48xf32> to vector<8x16xf32>
    %143 = arith.mulf %142, %93 : vector<8x16xf32>
    %144 = vector.extract_strided_slice %132 {offsets = [0, 0], sizes = [8, 16], strides = [1, 1]} : vector<8x48xf32> to vector<8x16xf32>
    %145 = arith.mulf %144, %136 : vector<8x16xf32>
    %146 = arith.addf %143, %145 : vector<8x16xf32>
    %147 = vector.extract_strided_slice %126 {offsets = [0, 32], sizes = [8, 16], strides = [1, 1]} : vector<8x48xf32> to vector<8x16xf32>
    %148 = math.tanh %141 : vector<8x16xf32>
    %149 = arith.mulf %147, %148 : vector<8x16xf32>
    %150 = vector.extract_strided_slice %132 {offsets = [0, 32], sizes = [8, 16], strides = [1, 1]} : vector<8x48xf32> to vector<8x16xf32>
    %151 = math.tanh %146 : vector<8x16xf32>
    %152 = arith.mulf %150, %151 : vector<8x16xf32>
    %153 = arith.index_cast %c2_i32 : i32 to index
    %c0_36 = arith.constant 0 : index
    %c0_37 = arith.constant 0 : index
    %154 = vector.load %arg9[%153, %c0_36, %c0_37] : memref<4x8x16xf32, #tpu.memory_space<vmem>>, vector<1x8x16xf32>
    %155 = vector.shape_cast %154 : vector<1x8x16xf32> to vector<8x16xf32>
    %156 = vector.shape_cast %149 : vector<8x16xf32> to vector<1x8x16xf32>
    tpu.vector_store %arg9[%153, %c0_36, %c0_37], %156 {strides = array<i32>} : memref<4x8x16xf32, #tpu.memory_space<vmem>>, vector<1x8x16xf32>,
    %c3_i32_38 = arith.constant 3 : i32
    %157 = arith.subi %c3_i32_38, %c2_i32 : i32
    %158 = arith.index_cast %157 : i32 to index
    %c0_39 = arith.constant 0 : index
    %c0_40 = arith.constant 0 : index
    %159 = vector.load %arg10[%158, %c0_39, %c0_40] : memref<4x8x16xf32, #tpu.memory_space<vmem>>, vector<1x8x16xf32>
    %160 = vector.shape_cast %159 : vector<1x8x16xf32> to vector<8x16xf32>
    %161 = vector.shape_cast %152 : vector<8x16xf32> to vector<1x8x16xf32>
    tpu.vector_store %arg10[%158, %c0_39, %c0_40], %161 {strides = array<i32>} : memref<4x8x16xf32, #tpu.memory_space<vmem>>, vector<1x8x16xf32>,
    %c3_i32_41 = arith.constant 3 : i32
    %162 = arith.truncf %149 : vector<8x16xf32> to vector<8x16xbf16>
    %cst_42 = arith.constant dense<0.000000e+00> : vector<8x64xf32>
    %163 = tpu.matmul %162, %0, %cst_42 {dimension_numbers = #tpu.dot_dimension_numbers<[1], [0], [0], [1], [0, 0, 1, 1], [], []>} : vector<8x16xbf16>, vector<16x64xbf16>, vector<8x64xf32> -> vector<8x64xf32>
    %164 = arith.index_cast %c3_i32_41 : i32 to index
    %c0_43 = arith.constant 0 : index
    %c0_44 = arith.constant 0 : index
    %165 = vector.load %arg1[%164, %c0_43, %c0_44] : memref<4x8x64xf32, #tpu.memory_space<vmem>>, vector<1x8x64xf32>
    %166 = vector.shape_cast %165 : vector<1x8x64xf32> to vector<8x64xf32>
    %167 = arith.addf %163, %166 : vector<8x64xf32>
    %168 = arith.truncf %152 : vector<8x16xf32> to vector<8x16xbf16>
    %cst_45 = arith.constant dense<0.000000e+00> : vector<8x64xf32>
    %169 = tpu.matmul %168, %1, %cst_45 {dimension_numbers = #tpu.dot_dimension_numbers<[1], [0], [0], [1], [0, 0, 1, 1], [], []>} : vector<8x16xbf16>, vector<16x64xbf16>, vector<8x64xf32> -> vector<8x64xf32>
    %170 = arith.index_cast %c3_i32_41 : i32 to index
    %c0_46 = arith.constant 0 : index
    %c0_47 = arith.constant 0 : index
    %171 = vector.load %arg2[%170, %c0_46, %c0_47] : memref<4x8x64xf32, #tpu.memory_space<vmem>>, vector<1x8x64xf32>
    %172 = vector.shape_cast %171 : vector<1x8x64xf32> to vector<8x64xf32>
    %173 = arith.addf %169, %172 : vector<8x64xf32>
    %174 = vector.extract_strided_slice %167 {offsets = [0, 0], sizes = [8, 48], strides = [1, 1]} : vector<8x64xf32> to vector<8x48xf32>
    %175 = arith.negf %174 : vector<8x48xf32>
    %176 = math.exp %175 : vector<8x48xf32>
    %cst_48 = arith.constant 1.000000e+00 : f32
    %177 = vector.broadcast %cst_48 : f32 to vector<8x48xf32>
    %178 = arith.addf %177, %176 : vector<8x48xf32>
    %179 = arith.divf %177, %178 : vector<8x48xf32>
    %180 = vector.extract_strided_slice %173 {offsets = [0, 0], sizes = [8, 48], strides = [1, 1]} : vector<8x64xf32> to vector<8x48xf32>
    %181 = arith.negf %180 : vector<8x48xf32>
    %182 = math.exp %181 : vector<8x48xf32>
    %cst_49 = arith.constant 1.000000e+00 : f32
    %183 = vector.broadcast %cst_49 : f32 to vector<8x48xf32>
    %184 = arith.addf %183, %182 : vector<8x48xf32>
    %185 = arith.divf %183, %184 : vector<8x48xf32>
    %186 = vector.extract_strided_slice %167 {offsets = [0, 48], sizes = [8, 16], strides = [1, 1]} : vector<8x64xf32> to vector<8x16xf32>
    %187 = math.tanh %186 : vector<8x16xf32>
    %188 = vector.extract_strided_slice %173 {offsets = [0, 48], sizes = [8, 16], strides = [1, 1]} : vector<8x64xf32> to vector<8x16xf32>
    %189 = math.tanh %188 : vector<8x16xf32>
    %190 = vector.extract_strided_slice %179 {offsets = [0, 16], sizes = [8, 16], strides = [1, 1]} : vector<8x48xf32> to vector<8x16xf32>
    %191 = arith.mulf %190, %141 : vector<8x16xf32>
    %192 = vector.extract_strided_slice %179 {offsets = [0, 0], sizes = [8, 16], strides = [1, 1]} : vector<8x48xf32> to vector<8x16xf32>
    %193 = arith.mulf %192, %187 : vector<8x16xf32>
    %194 = arith.addf %191, %193 : vector<8x16xf32>
    %195 = vector.extract_strided_slice %185 {offsets = [0, 16], sizes = [8, 16], strides = [1, 1]} : vector<8x48xf32> to vector<8x16xf32>
    %196 = arith.mulf %195, %146 : vector<8x16xf32>
    %197 = vector.extract_strided_slice %185 {offsets = [0, 0], sizes = [8, 16], strides = [1, 1]} : vector<8x48xf32> to vector<8x16xf32>
    %198 = arith.mulf %197, %189 : vector<8x16xf32>
    %199 = arith.addf %196, %198 : vector<8x16xf32>
    %200 = vector.extract_strided_slice %179 {offsets = [0, 32], sizes = [8, 16], strides = [1, 1]} : vector<8x48xf32> to vector<8x16xf32>
    %201 = math.tanh %194 : vector<8x16xf32>
    %202 = arith.mulf %200, %201 : vector<8x16xf32>
    %203 = vector.extract_strided_slice %185 {offsets = [0, 32], sizes = [8, 16], strides = [1, 1]} : vector<8x48xf32> to vector<8x16xf32>
    %204 = math.tanh %199 : vector<8x16xf32>
    %205 = arith.mulf %203, %204 : vector<8x16xf32>
    %206 = arith.index_cast %c3_i32_41 : i32 to index
    %c0_50 = arith.constant 0 : index
    %c0_51 = arith.constant 0 : index
    %207 = vector.load %arg9[%206, %c0_50, %c0_51] : memref<4x8x16xf32, #tpu.memory_space<vmem>>, vector<1x8x16xf32>
    %208 = vector.shape_cast %207 : vector<1x8x16xf32> to vector<8x16xf32>
    %209 = vector.shape_cast %202 : vector<8x16xf32> to vector<1x8x16xf32>
    tpu.vector_store %arg9[%206, %c0_50, %c0_51], %209 {strides = array<i32>} : memref<4x8x16xf32, #tpu.memory_space<vmem>>, vector<1x8x16xf32>,
    %c3_i32_52 = arith.constant 3 : i32
    %210 = arith.subi %c3_i32_52, %c3_i32_41 : i32
    %211 = arith.index_cast %210 : i32 to index
    %c0_53 = arith.constant 0 : index
    %c0_54 = arith.constant 0 : index
    %212 = vector.load %arg10[%211, %c0_53, %c0_54] : memref<4x8x16xf32, #tpu.memory_space<vmem>>, vector<1x8x16xf32>
    %213 = vector.shape_cast %212 : vector<1x8x16xf32> to vector<8x16xf32>
    %214 = vector.shape_cast %205 : vector<8x16xf32> to vector<1x8x16xf32>
    tpu.vector_store %arg10[%211, %c0_53, %c0_54], %214 {strides = array<i32>} : memref<4x8x16xf32, #tpu.memory_space<vmem>>, vector<1x8x16xf32>,
    %c4_i32 = arith.constant 4 : i32
    %c0_55 = arith.constant 0 : index
    %c0_56 = arith.constant 0 : index
    %c0_57 = arith.constant 0 : index
    %215 = vector.load %arg9[%c0_55, %c0_56, %c0_57] : memref<4x8x16xf32, #tpu.memory_space<vmem>>, vector<4x8x16xf32>
    %c0_58 = arith.constant 0 : index
    %c0_59 = arith.constant 0 : index
    %c0_60 = arith.constant 0 : index
    %216 = vector.load %arg10[%c0_58, %c0_59, %c0_60] : memref<4x8x16xf32, #tpu.memory_space<vmem>>, vector<4x8x16xf32>
    %217 = arith.addf %215, %216 : vector<4x8x16xf32>
    %218 = math.tanh %217 : vector<4x8x16xf32>
    %c0_61 = arith.constant 0 : index
    %c0_62 = arith.constant 0 : index
    %c0_63 = arith.constant 0 : index
    %219 = vector.load %arg5[%c0_61, %c0_62, %c0_63] : memref<1x1x16xf32, #tpu.memory_space<vmem>>, vector<1x1x16xf32>
    %220 = vector.broadcast %219 : vector<1x1x16xf32> to vector<4x8x16xf32>
    %221 = arith.mulf %218, %220 : vector<4x8x16xf32>
    %cst_64 = arith.constant dense<0.000000e+00> : vector<4x8xf32>
    %222 = vector.multi_reduction <add>, %221, %cst_64 [2] : vector<4x8x16xf32> to vector<4x8xf32>
    %223 = vector.shape_cast %222 : vector<4x8xf32> to vector<4x8x1xf32>
    %cst_65 = arith.constant dense<0xFF800000> : vector<8x1xf32>
    %224 = vector.multi_reduction <maximumf>, %223, %cst_65 [0] : vector<4x8x1xf32> to vector<8x1xf32>
    %225 = vector.shape_cast %224 : vector<8x1xf32> to vector<1x8x1xf32>
    %226 = vector.broadcast %225 : vector<1x8x1xf32> to vector<4x8x1xf32>
    %227 = arith.subf %223, %226 : vector<4x8x1xf32>
    %228 = math.exp %227 : vector<4x8x1xf32>
    %cst_66 = arith.constant dense<0.000000e+00> : vector<8x1xf32>
    %229 = vector.multi_reduction <add>, %228, %cst_66 [0] : vector<4x8x1xf32> to vector<8x1xf32>
    %230 = vector.shape_cast %229 : vector<8x1xf32> to vector<1x8x1xf32>
    %231 = tpu.reciprocal %230 {approx = true} : vector<1x8x1xf32> -> vector<1x8x1xf32>
    %232 = vector.broadcast %231 : vector<1x8x1xf32> to vector<4x8x1xf32>
    %233 = arith.mulf %228, %232 : vector<4x8x1xf32>
    %234 = vector.broadcast %233 : vector<4x8x1xf32> to vector<4x8x16xf32>
    %235 = arith.mulf %217, %234 : vector<4x8x16xf32>
    %cst_67 = arith.constant dense<0.000000e+00> : vector<8x16xf32>
    %236 = vector.multi_reduction <add>, %235, %cst_67 [0] : vector<4x8x16xf32> to vector<8x16xf32>
    %237 = math.tanh %236 : vector<8x16xf32>
    %238 = arith.truncf %237 : vector<8x16xf32> to vector<8x16xbf16>
    %c0_68 = arith.constant 0 : index
    %c0_69 = arith.constant 0 : index
    %239 = vector.load %arg6[%c0_68, %c0_69] : memref<16x128xbf16, #tpu.memory_space<vmem>>, vector<16x128xbf16>
    %cst_70 = arith.constant dense<0.000000e+00> : vector<8x128xf32>
    %240 = tpu.matmul %238, %239, %cst_70 {dimension_numbers = #tpu.dot_dimension_numbers<[1], [0], [0], [1], [0, 0, 1, 1], [], []>} : vector<8x16xbf16>, vector<16x128xbf16>, vector<8x128xf32> -> vector<8x128xf32>
    %c0_71 = arith.constant 0 : index
    %c0_72 = arith.constant 0 : index
    %241 = vector.load %arg7[%c0_71, %c0_72] : memref<1x128xf32, #tpu.memory_space<vmem>>, vector<1x128xf32>
    %242 = vector.broadcast %241 : vector<1x128xf32> to vector<8x128xf32>
    %243 = arith.addf %240, %242 : vector<8x128xf32>
    %c0_73 = arith.constant 0 : index
    %c0_74 = arith.constant 0 : index
    %244 = vector.load %arg8[%c0_73, %c0_74] : memref<8x128xf32, #tpu.memory_space<vmem>>, vector<8x128xf32>
    tpu.vector_store %arg8[%c0_73, %c0_74], %243 {strides = array<i32>} : memref<8x128xf32, #tpu.memory_space<vmem>>, vector<8x128xf32>,
    return
  }
  func.func @transform_0(%arg0: i32) -> (i32, i32, i32) {
    %c0_i32 = arith.constant 0 : i32
    %c0_i32_0 = arith.constant 0 : i32
    %c0_i32_1 = arith.constant 0 : i32
    return %c0_i32, %arg0, %c0_i32_0 : i32, i32, i32
  }
  func.func @transform_1(%arg0: i32) -> (i32, i32, i32) {
    %c0_i32 = arith.constant 0 : i32
    %c0_i32_0 = arith.constant 0 : i32
    %c0_i32_1 = arith.constant 0 : i32
    return %c0_i32, %arg0, %c0_i32_0 : i32, i32, i32
  }
  func.func @transform_2(%arg0: i32) -> (i32, i32) {
    %c0_i32 = arith.constant 0 : i32
    %c0_i32_0 = arith.constant 0 : i32
    %c0_i32_1 = arith.constant 0 : i32
    return %c0_i32, %c0_i32_0 : i32, i32
  }
  func.func @transform_3(%arg0: i32) -> (i32, i32) {
    %c0_i32 = arith.constant 0 : i32
    %c0_i32_0 = arith.constant 0 : i32
    %c0_i32_1 = arith.constant 0 : i32
    return %c0_i32, %c0_i32_0 : i32, i32
  }
  func.func @transform_4(%arg0: i32) -> (i32, i32, i32) {
    %c0_i32 = arith.constant 0 : i32
    %c0_i32_0 = arith.constant 0 : i32
    %c0_i32_1 = arith.constant 0 : i32
    %c0_i32_2 = arith.constant 0 : i32
    return %c0_i32, %c0_i32_0, %c0_i32_1 : i32, i32, i32
  }
  func.func @transform_5(%arg0: i32) -> (i32, i32) {
    %c0_i32 = arith.constant 0 : i32
    %c0_i32_0 = arith.constant 0 : i32
    %c0_i32_1 = arith.constant 0 : i32
    return %c0_i32, %c0_i32_0 : i32, i32
  }
  func.func @transform_6(%arg0: i32) -> (i32, i32) {
    %c0_i32 = arith.constant 0 : i32
    %c0_i32_0 = arith.constant 0 : i32
    %c0_i32_1 = arith.constant 0 : i32
    return %c0_i32, %c0_i32_0 : i32, i32
  }
  func.func @transform_7(%arg0: i32) -> (i32, i32) {
    %c0_i32 = arith.constant 0 : i32
    %c0_i32_0 = arith.constant 0 : i32
    return %arg0, %c0_i32 : i32, i32
  }
}

</mosaic_0001>

<llo_original>
// kernel: att_bilstm_forward.1
$region0: #{att_bilstm_forward.1}
  #allocation0 [shape = 'u32[]', space=smem, size = 0x4, offset = 0x4, fixed_abs, tag = 'smem constant byte address 0x4 - core index']
  #allocation1 [shape = 'u32[144,128]{1,0:T(1,128)}', space=vmem, size = 0x12000, scoped, tag = 'internal scratch']
  #allocation2 [shape = 'f32[4,8,16]{2,1,0:T(8,128)}', space=vmem, size = 0x4000, scoped, tag = 'scratch operand']
  #allocation3 [shape = 'f32[4,8,16]{2,1,0:T(8,128)}', space=vmem, size = 0x4000, scoped, tag = 'scratch operand']
  %s0 = inlined_call_operand.vmem [shape: f32[4,8,64], index: 0, kind: input, shape index: {}]
  %s1 = inlined_call_operand.vmem [shape: f32[4,8,64], index: 1, kind: input, shape index: {}]
  %s2 = inlined_call_operand.vmem [shape: bf16[16,64], index: 2, kind: input, shape index: {}]
  %s3 = inlined_call_operand.vmem [shape: bf16[16,64], index: 3, kind: input, shape index: {}]
  %s4 = inlined_call_operand.vmem [shape: f32[1,1,16], index: 4, kind: input, shape index: {}]
  %s5 = inlined_call_operand.vmem [shape: bf16[16,128], index: 5, kind: input, shape index: {}]
  %s6 = inlined_call_operand.vmem [shape: f32[1,128], index: 6, kind: input, shape index: {}]
  %s7 = inlined_call_operand.vmem [shape: f32[8,128], index: 7, kind: output, shape index: {}]
  %s8 = sld [smem:[#allocation0]]
  $region38: #{att_bilstm_forward.1} parent=0
    _
  %s10 = ssub.s32 1, %s8
  %s11 = scalar_select 0, %s10, %s8
  // Predicated region
  $region2: #{att_bilstm_forward.1} parent=0 // pred_check
    _
  $region3: #{att_bilstm_forward.1} parent=0 // pred_check_branch
    %13 = sbr.rel (0) target = $region5
  $region4: #{att_bilstm_forward.1} parent=0 // pred_region
    _
  $region5: #{att_bilstm_forward.1} parent=0 // pred_fallthru
    _
  // Predicated region
  $region6: #{att_bilstm_forward.1} parent=0 // pred_check
    _
  $region7: #{att_bilstm_forward.1} parent=0 // pred_check_branch
    %15 = sbr.rel (0) target = $region9
  $region8: #{att_bilstm_forward.1} parent=0 // pred_region
    _
  $region9: #{att_bilstm_forward.1} parent=0 // pred_fallthru
    _
  // Predicated region
  $region10: #{att_bilstm_forward.1} parent=0 // pred_check
    _
  $region11: #{att_bilstm_forward.1} parent=0 // pred_check_branch
    %17 = sbr.rel (0) target = $region13
  $region12: #{att_bilstm_forward.1} parent=0 // pred_region
    _
  $region13: #{att_bilstm_forward.1} parent=0 // pred_fallthru
    _
  // Predicated region
  $region14: #{att_bilstm_forward.1} parent=0 // pred_check
    _
  $region15: #{att_bilstm_forward.1} parent=0 // pred_check_branch
    %19 = sbr.rel (0) target = $region17
  $region16: #{att_bilstm_forward.1} parent=0 // pred_region
    _
  $region17: #{att_bilstm_forward.1} parent=0 // pred_fallthru
    _
  // Predicated region
  $region18: #{att_bilstm_forward.1} parent=0 // pred_check
    _
  $region19: #{att_bilstm_forward.1} parent=0 // pred_check_branch
    %21 = sbr.rel (0) target = $region21
  $region20: #{att_bilstm_forward.1} parent=0 // pred_region
    _
  $region21: #{att_bilstm_forward.1} parent=0 // pred_fallthru
    _
  // Predicated region
  $region22: #{att_bilstm_forward.1} parent=0 // pred_check
    _
  $region23: #{att_bilstm_forward.1} parent=0 // pred_check_branch
    %23 = sbr.rel (0) target = $region25
  $region24: #{att_bilstm_forward.1} parent=0 // pred_region
    _
  $region25: #{att_bilstm_forward.1} parent=0 // pred_fallthru
    _
  // Predicated region
  $region26: #{att_bilstm_forward.1} parent=0 // pred_check
    _
  $region27: #{att_bilstm_forward.1} parent=0 // pred_check_branch
    %25 = sbr.rel (0) target = $region29
  $region28: #{att_bilstm_forward.1} parent=0 // pred_region
    _
  $region29: #{att_bilstm_forward.1} parent=0 // pred_fallthru
    _
  %v27 = vld [vmem:[%s2] sm:$0xf]
  %v28 = vld [vmem:[%s2 + $0x4] sm:$0xf]
  %v29 = vld [vmem:[%s3] sm:$0xf]
  %v30 = vld [vmem:[%s3 + $0x4] sm:$0xf]
  %v31 = vld [vmem:[%s0] sm:$0xff]
  %v34 = vunpack.c.l.b16 %v27
  %v35 = vunpack.c.l.b16 %v28
  %v36 = vpack.c.b16 %v35, %v34
  %vm38 = vcmask 130048
  %v40 = vsel %vm38, 0, 0
  %42 = vmatprep.subr.bf16.mxu0 0
  %43 = vmatpush1.bf16.msra.mxu0 0
  %44 = vmatprep.subr.bf16.mxu0 0
  %45 = vmatpush1.bf16.msra.mxu0 0
  %46 = vmatprep.subr.bf16.mxu0 0
  %47 = vmatpush1.bf16.msra.mxu0 0
  %48 = vmatprep.subr.bf16.mxu0 0
  %49 = vmatpush1.bf16.msra.mxu0 0
  %50 = vmatprep.subr.bf16.mxu0 0
  %51 = vmatpush1.bf16.msra.mxu0 0
  %52 = vmatprep.subr.bf16.mxu0 0
  %53 = vmatpush1.bf16.msra.mxu0 0
  %54 = vmatprep.subr.bf16.mxu0 0
  %55 = vmatpush1.bf16.msra.mxu0 0
  %56 = vmatprep.subr.bf16.mxu0 0
  %57 = vmatpush1.bf16.msra.mxu0 %v36
  %58 = vmatprep.subr.bf16.mxu0 0
  %59 = vmatpush2.bf16.msra.mxu0 0
  %60 = vmatprep.subr.bf16.mxu0 0
  %61 = vmatpush2.bf16.msra.mxu0 0
  %62 = vmatprep.subr.bf16.mxu0 0
  %63 = vmatpush2.bf16.msra.mxu0 0
  %64 = vmatprep.subr.bf16.mxu0 0
  %65 = vmatpush2.bf16.msra.mxu0 0
  %66 = vmatprep.subr.bf16.mxu0 0
  %67 = vmatpush2.bf16.msra.mxu0 0
  %68 = vmatprep.subr.bf16.mxu0 0
  %69 = vmatpush2.bf16.msra.mxu0 0
  %70 = vmatprep.subr.bf16.mxu0 0
  %71 = vmatpush2.bf16.msra.mxu0 0
  %72 = vmatprep.subr.bf16.mxu0 0
  %73 = vmatpush2.bf16.msra.mxu0 0
  %74 = vmatprep.mubr.bf16.mxu0 0
  %75 = vmatmul.mubr.bf16.gmra.mxu0 %v40
  %v76 = vpop.f32.mrf.mxu0
  %v77 = vadd.f32 %v31, %v76
  %v78 = vpop.f32.mrf.mxu0
  %v79 = vpop.f32.mrf.mxu0
  %v80 = vpop.f32.mrf.mxu0
  %81 = vdwg.mxu0
  %v82 = vld [vmem:[%s1] sm:$0xff]
  %v85 = vunpack.c.l.b16 %v29
  %v86 = vunpack.c.l.b16 %v30
  %v87 = vpack.c.b16 %v86, %v85
  %89 = vmatprep.subr.bf16.mxu0 0
  %90 = vmatpush1.bf16.msra.mxu0 0
  %91 = vmatprep.subr.bf16.mxu0 0
  %92 = vmatpush1.bf16.msra.mxu0 0
  %93 = vmatprep.subr.bf16.mxu0 0
  %94 = vmatpush1.bf16.msra.mxu0 0
  %95 = vmatprep.subr.bf16.mxu0 0
  %96 = vmatpush1.bf16.msra.mxu0 0
  %97 = vmatprep.subr.bf16.mxu0 0
  %98 = vmatpush1.bf16.msra.mxu0 0
  %99 = vmatprep.subr.bf16.mxu0 0
  %100 = vmatpush1.bf16.msra.mxu0 0
  %101 = vmatprep.subr.bf16.mxu0 0
  %102 = vmatpush1.bf16.msra.mxu0 0
  %103 = vmatprep.subr.bf16.mxu0 0
  %104 = vmatpush1.bf16.msra.mxu0 %v87
  %105 = vmatprep.subr.bf16.mxu0 0
  %106 = vmatpush2.bf16.msra.mxu0 0
  %107 = vmatprep.subr.bf16.mxu0 0
  %108 = vmatpush2.bf16.msra.mxu0 0
  %109 = vmatprep.subr.bf16.mxu0 0
  %110 = vmatpush2.bf16.msra.mxu0 0
  %111 = vmatprep.subr.bf16.mxu0 0
  %112 = vmatpush2.bf16.msra.mxu0 0
  %113 = vmatprep.subr.bf16.mxu0 0
  %114 = vmatpush2.bf16.msra.mxu0 0
  %115 = vmatprep.subr.bf16.mxu0 0
  %116 = vmatpush2.bf16.msra.mxu0 0
  %117 = vmatprep.subr.bf16.mxu0 0
  %118 = vmatpush2.bf16.msra.mxu0 0
  %119 = vmatprep.subr.bf16.mxu0 0
  %120 = vmatpush2.bf16.msra.mxu0 0
  %121 = vmatprep.mubr.bf16.mxu0 0
  %122 = vmatmul.mubr.bf16.gmra.mxu0 %v40
  %v123 = vpop.f32.mrf.mxu0
  %v124 = vadd.f32 %v82, %v123
  %v125 = vpop.f32.mrf.mxu0
  %v126 = vpop.f32.mrf.mxu0
  %v127 = vpop.f32.mrf.mxu0
  %128 = vdwg.mxu0
  %v129 = vxor.u32 %v77, 2147483648
  %v130 = vmul.f32 %v129, 1.442695
  %v131 = vpow.pop %v130
  %v132 = vadd.f32 %v131, 1.0
  %v133 = vrcp.pop %v132
  %v134 = vmul.f32 1.0, %v133
  %v135 = vxor.u32 %v124, 2147483648
  %v136 = vmul.f32 %v135, 1.442695
  %v137 = vpow.pop %v136
  %v138 = vadd.f32 %v137, 1.0
  %v139 = vrcp.pop %v138
  %v140 = vmul.f32 1.0, %v139
  %v141 = vtanh.pop %v77
  %v142 = vtanh.pop %v124
  %v143 = vmul.f32 %v134, 0.0
  %145 = vrot.lane.b32.xlu0 %v141, 80
  %v146 = vpop.permute.xlu0 %145
  %v148 = vmul.f32 %v134, %v146
  %150 = vrot.lane.b32.xlu0 %v148, 16
  %v151 = vpop.permute.xlu0 %150
  %v153 = vadd.f32 %v143, %v151
  %v154 = vmul.f32 %v140, 0.0
  %156 = vrot.lane.b32.xlu0 %v142, 80
  %v157 = vpop.permute.xlu0 %156
  %v159 = vmul.f32 %v140, %v157
  %161 = vrot.lane.b32.xlu0 %v159, 16
  %v162 = vpop.permute.xlu0 %161
  %v164 = vadd.f32 %v154, %v162
  %v165 = vtanh.pop %v153
  %167 = vrot.lane.b32.xlu0 %v165, 16
  %v168 = vpop.permute.xlu0 %167
  %v170 = vmul.f32 %v134, %v168
  %v171 = vtanh.pop %v164
  %173 = vrot.lane.b32.xlu0 %v171, 16
  %v174 = vpop.permute.xlu0 %173
  %v176 = vmul.f32 %v140, %v174
  %178 = vrot.lane.b32.xlu0 %v170, 96
  %v179 = vpop.permute.xlu0 %178
  %181 = vst.msk [vmem:[#allocation2] sm:$0xff] %vm38, %v179
  %183 = vrot.lane.b32.xlu0 %v176, 96
  %v184 = vpop.permute.xlu0 %183
  %s186 = scalar_lea.vmem [#allocation3], 24
  %187 = vst.msk [vmem:[%s186] sm:$0xff] %vm38, %v184
  %v188 = vpack.c.bf16 %v170, %v170
  %s189 = scalar_lea.vmem %s0, 8
  %v190 = vld [vmem:[%s189] sm:$0xff]
  %192 = vrot.lane.b32.xlu0 %v188, 96
  %v193 = vpop.permute.xlu0 %192
  %v195 = vsel %vm38, %v193, 0
  %197 = vmatprep.subr.bf16.mxu0 0
  %198 = vmatpush1.bf16.msra.mxu0 0
  %199 = vmatprep.subr.bf16.mxu0 0
  %200 = vmatpush1.bf16.msra.mxu0 0
  %201 = vmatprep.subr.bf16.mxu0 0
  %202 = vmatpush1.bf16.msra.mxu0 0
  %203 = vmatprep.subr.bf16.mxu0 0
  %204 = vmatpush1.bf16.msra.mxu0 0
  %205 = vmatprep.subr.bf16.mxu0 0
  %206 = vmatpush1.bf16.msra.mxu0 0
  %207 = vmatprep.subr.bf16.mxu0 0
  %208 = vmatpush1.bf16.msra.mxu0 0
  %209 = vmatprep.subr.bf16.mxu0 0
  %210 = vmatpush1.bf16.msra.mxu0 0
  %211 = vmatprep.subr.bf16.mxu0 0
  %212 = vmatpush1.bf16.msra.mxu0 %v36
  %213 = vmatprep.subr.bf16.mxu0 0
  %214 = vmatpush2.bf16.msra.mxu0 0
  %215 = vmatprep.subr.bf16.mxu0 0
  %216 = vmatpush2.bf16.msra.mxu0 0
  %217 = vmatprep.subr.bf16.mxu0 0
  %218 = vmatpush2.bf16.msra.mxu0 0
  %219 = vmatprep.subr.bf16.mxu0 0
  %220 = vmatpush2.bf16.msra.mxu0 0
  %221 = vmatprep.subr.bf16.mxu0 0
  %222 = vmatpush2.bf16.msra.mxu0 0
  %223 = vmatprep.subr.bf16.mxu0 0
  %224 = vmatpush2.bf16.msra.mxu0 0
  %225 = vmatprep.subr.bf16.mxu0 0
  %226 = vmatpush2.bf16.msra.mxu0 0
  %227 = vmatprep.subr.bf16.mxu0 0
  %228 = vmatpush2.bf16.msra.mxu0 0
  %229 = vmatprep.mubr.bf16.mxu0 0
  %230 = vmatmul.mubr.bf16.gmra.mxu0 %v195
  %v231 = vpop.f32.mrf.mxu0
  %v232 = vadd.f32 %v190, %v231
  %v233 = vpop.f32.mrf.mxu0
  %v234 = vpop.f32.mrf.mxu0
  %v235 = vpop.f32.mrf.mxu0
  %236 = vdwg.mxu0
  %v237 = vpack.c.bf16 %v176, %v176
  %s238 = scalar_lea.vmem %s1, 8
  %v239 = vld [vmem:[%s238] sm:$0xff]
  %241 = vrot.lane.b32.xlu0 %v237, 96
  %v242 = vpop.permute.xlu0 %241
  %v244 = vsel %vm38, %v242, 0
  %246 = vmatprep.subr.bf16.mxu0 0
  %247 = vmatpush1.bf16.msra.mxu0 0
  %248 = vmatprep.subr.bf16.mxu0 0
  %249 = vmatpush1.bf16.msra.mxu0 0
  %250 = vmatprep.subr.bf16.mxu0 0
  %251 = vmatpush1.bf16.msra.mxu0 0
  %252 = vmatprep.subr.bf16.mxu0 0
  %253 = vmatpush1.bf16.msra.mxu0 0
  %254 = vmatprep.subr.bf16.mxu0 0
  %255 = vmatpush1.bf16.msra.mxu0 0
  %256 = vmatprep.subr.bf16.mxu0 0
  %257 = vmatpush1.bf16.msra.mxu0 0
  %258 = vmatprep.subr.bf16.mxu0 0
  %259 = vmatpush1.bf16.msra.mxu0 0
  %260 = vmatprep.subr.bf16.mxu0 0
  %261 = vmatpush1.bf16.msra.mxu0 %v87
  %262 = vmatprep.subr.bf16.mxu0 0
  %263 = vmatpush2.bf16.msra.mxu0 0
  %264 = vmatprep.subr.bf16.mxu0 0
  %265 = vmatpush2.bf16.msra.mxu0 0
  %266 = vmatprep.subr.bf16.mxu0 0
  %267 = vmatpush2.bf16.msra.mxu0 0
  %268 = vmatprep.subr.bf16.mxu0 0
  %269 = vmatpush2.bf16.msra.mxu0 0
  %270 = vmatprep.subr.bf16.mxu0 0
  %271 = vmatpush2.bf16.msra.mxu0 0
  %272 = vmatprep.subr.bf16.mxu0 0
  %273 = vmatpush2.bf16.msra.mxu0 0
  %274 = vmatprep.subr.bf16.mxu0 0
  %275 = vmatpush2.bf16.msra.mxu0 0
  %276 = vmatprep.subr.bf16.mxu0 0
  %277 = vmatpush2.bf16.msra.mxu0 0
  %278 = vmatprep.mubr.bf16.mxu0 0
  %279 = vmatmul.mubr.bf16.gmra.mxu0 %v244
  %v280 = vpop.f32.mrf.mxu0
  %v281 = vadd.f32 %v239, %v280
  %v282 = vpop.f32.mrf.mxu0
  %v283 = vpop.f32.mrf.mxu0
  %v284 = vpop.f32.mrf.mxu0
  %285 = vdwg.mxu0
  %v286 = vxor.u32 %v232, 2147483648
  %v287 = vmul.f32 %v286, 1.442695
  %v288 = vpow.pop %v287
  %v289 = vadd.f32 %v288, 1.0
  %v290 = vrcp.pop %v289
  %v291 = vmul.f32 1.0, %v290
  %v292 = vxor.u32 %v281, 2147483648
  %v293 = vmul.f32 %v292, 1.442695
  %v294 = vpow.pop %v293
  %v295 = vadd.f32 %v294, 1.0
  %v296 = vrcp.pop %v295
  %v297 = vmul.f32 1.0, %v296
  %v298 = vtanh.pop %v232
  %v299 = vtanh.pop %v281
  %v300 = vmul.f32 %v291, %v153
  %302 = vrot.lane.b32.xlu0 %v298, 80
  %v303 = vpop.permute.xlu0 %302
  %v305 = vmul.f32 %v291, %v303
  %307 = vrot.lane.b32.xlu0 %v305, 16
  %v308 = vpop.permute.xlu0 %307
  %v310 = vadd.f32 %v300, %v308
  %v311 = vmul.f32 %v297, %v164
  %313 = vrot.lane.b32.xlu0 %v299, 80
  %v314 = vpop.permute.xlu0 %313
  %v316 = vmul.f32 %v297, %v314
  %318 = vrot.lane.b32.xlu0 %v316, 16
  %v319 = vpop.permute.xlu0 %318
  %v321 = vadd.f32 %v311, %v319
  %v322 = vtanh.pop %v310
  %324 = vrot.lane.b32.xlu0 %v322, 16
  %v325 = vpop.permute.xlu0 %324
  %v327 = vmul.f32 %v291, %v325
  %v328 = vtanh.pop %v321
  %330 = vrot.lane.b32.xlu0 %v328, 16
  %v331 = vpop.permute.xlu0 %330
  %v333 = vmul.f32 %v297, %v331
  %335 = vrot.lane.b32.xlu0 %v327, 96
  %v336 = vpop.permute.xlu0 %335
  %s338 = scalar_lea.vmem [#allocation2], 8
  %339 = vst.msk [vmem:[%s338] sm:$0xff] %vm38, %v336
  %341 = vrot.lane.b32.xlu0 %v333, 96
  %v342 = vpop.permute.xlu0 %341
  %s344 = scalar_lea.vmem [#allocation3], 16
  %345 = vst.msk [vmem:[%s344] sm:$0xff] %vm38, %v342
  %v346 = vpack.c.bf16 %v327, %v327
  %s347 = scalar_lea.vmem %s0, 16
  %v348 = vld [vmem:[%s347] sm:$0xff]
  %350 = vrot.lane.b32.xlu0 %v346, 96
  %v351 = vpop.permute.xlu0 %350
  %v353 = vsel %vm38, %v351, 0
  %355 = vmatprep.subr.bf16.mxu0 0
  %356 = vmatpush1.bf16.msra.mxu0 0
  %357 = vmatprep.subr.bf16.mxu0 0
  %358 = vmatpush1.bf16.msra.mxu0 0
  %359 = vmatprep.subr.bf16.mxu0 0
  %360 = vmatpush1.bf16.msra.mxu0 0
  %361 = vmatprep.subr.bf16.mxu0 0
  %362 = vmatpush1.bf16.msra.mxu0 0
  %363 = vmatprep.subr.bf16.mxu0 0
  %364 = vmatpush1.bf16.msra.mxu0 0
  %365 = vmatprep.subr.bf16.mxu0 0
  %366 = vmatpush1.bf16.msra.mxu0 0
  %367 = vmatprep.subr.bf16.mxu0 0
  %368 = vmatpush1.bf16.msra.mxu0 0
  %369 = vmatprep.subr.bf16.mxu0 0
  %370 = vmatpush1.bf16.msra.mxu0 %v36
  %371 = vmatprep.subr.bf16.mxu0 0
  %372 = vmatpush2.bf16.msra.mxu0 0
  %373 = vmatprep.subr.bf16.mxu0 0
  %374 = vmatpush2.bf16.msra.mxu0 0
  %375 = vmatprep.subr.bf16.mxu0 0
  %376 = vmatpush2.bf16.msra.mxu0 0
  %377 = vmatprep.subr.bf16.mxu0 0
  %378 = vmatpush2.bf16.msra.mxu0 0
  %379 = vmatprep.subr.bf16.mxu0 0
  %380 = vmatpush2.bf16.msra.mxu0 0
  %381 = vmatprep.subr.bf16.mxu0 0
  %382 = vmatpush2.bf16.msra.mxu0 0
  %383 = vmatprep.subr.bf16.mxu0 0
  %384 = vmatpush2.bf16.msra.mxu0 0
  %385 = vmatprep.subr.bf16.mxu0 0
  %386 = vmatpush2.bf16.msra.mxu0 0
  %387 = vmatprep.mubr.bf16.mxu0 0
  %388 = vmatmul.mubr.bf16.gmra.mxu0 %v353
  %v389 = vpop.f32.mrf.mxu0
  %v390 = vadd.f32 %v348, %v389
  %v391 = vpop.f32.mrf.mxu0
  %v392 = vpop.f32.mrf.mxu0
  %v393 = vpop.f32.mrf.mxu0
  %394 = vdwg.mxu0
  %v395 = vpack.c.bf16 %v333, %v333
  %s396 = scalar_lea.vmem %s1, 16
  %v397 = vld [vmem:[%s396] sm:$0xff]
  %399 = vrot.lane.b32.xlu0 %v395, 96
  %v400 = vpop.permute.xlu0 %399
  %v402 = vsel %vm38, %v400, 0
  %404 = vmatprep.subr.bf16.mxu0 0
  %405 = vmatpush1.bf16.msra.mxu0 0
  %406 = vmatprep.subr.bf16.mxu0 0
  %407 = vmatpush1.bf16.msra.mxu0 0
  %408 = vmatprep.subr.bf16.mxu0 0
  %409 = vmatpush1.bf16.msra.mxu0 0
  %410 = vmatprep.subr.bf16.mxu0 0
  %411 = vmatpush1.bf16.msra.mxu0 0
  %412 = vmatprep.subr.bf16.mxu0 0
  %413 = vmatpush1.bf16.msra.mxu0 0
  %414 = vmatprep.subr.bf16.mxu0 0
  %415 = vmatpush1.bf16.msra.mxu0 0
  %416 = vmatprep.subr.bf16.mxu0 0
  %417 = vmatpush1.bf16.msra.mxu0 0
  %418 = vmatprep.subr.bf16.mxu0 0
  %419 = vmatpush1.bf16.msra.mxu0 %v87
  %420 = vmatprep.subr.bf16.mxu0 0
  %421 = vmatpush2.bf16.msra.mxu0 0
  %422 = vmatprep.subr.bf16.mxu0 0
  %423 = vmatpush2.bf16.msra.mxu0 0
  %424 = vmatprep.subr.bf16.mxu0 0
  %425 = vmatpush2.bf16.msra.mxu0 0
  %426 = vmatprep.subr.bf16.mxu0 0
  %427 = vmatpush2.bf16.msra.mxu0 0
  %428 = vmatprep.subr.bf16.mxu0 0
  %429 = vmatpush2.bf16.msra.mxu0 0
  %430 = vmatprep.subr.bf16.mxu0 0
  %431 = vmatpush2.bf16.msra.mxu0 0
  %432 = vmatprep.subr.bf16.mxu0 0
  %433 = vmatpush2.bf16.msra.mxu0 0
  %434 = vmatprep.subr.bf16.mxu0 0
  %435 = vmatpush2.bf16.msra.mxu0 0
  %436 = vmatprep.mubr.bf16.mxu0 0
  %437 = vmatmul.mubr.bf16.gmra.mxu0 %v402
  %v438 = vpop.f32.mrf.mxu0
  %v439 = vadd.f32 %v397, %v438
  %v440 = vpop.f32.mrf.mxu0
  %v441 = vpop.f32.mrf.mxu0
  %v442 = vpop.f32.mrf.mxu0
  %443 = vdwg.mxu0
  %v444 = vxor.u32 %v390, 2147483648
  %v445 = vmul.f32 %v444, 1.442695
  %v446 = vpow.pop %v445
  %v447 = vadd.f32 %v446, 1.0
  %v448 = vrcp.pop %v447
  %v449 = vmul.f32 1.0, %v448
  %v450 = vxor.u32 %v439, 2147483648
  %v451 = vmul.f32 %v450, 1.442695
  %v452 = vpow.pop %v451
  %v453 = vadd.f32 %v452, 1.0
  %v454 = vrcp.pop %v453
  %v455 = vmul.f32 1.0, %v454
  %v456 = vtanh.pop %v390
  %v457 = vtanh.pop %v439
  %v458 = vmul.f32 %v449, %v310
  %460 = vrot.lane.b32.xlu0 %v456, 80
  %v461 = vpop.permute.xlu0 %460
  %v463 = vmul.f32 %v449, %v461
  %465 = vrot.lane.b32.xlu0 %v463, 16
  %v466 = vpop.permute.xlu0 %465
  %v468 = vadd.f32 %v458, %v466
  %v469 = vmul.f32 %v455, %v321
  %471 = vrot.lane.b32.xlu0 %v457, 80
  %v472 = vpop.permute.xlu0 %471
  %v474 = vmul.f32 %v455, %v472
  %476 = vrot.lane.b32.xlu0 %v474, 16
  %v477 = vpop.permute.xlu0 %476
  %v479 = vadd.f32 %v469, %v477
  %v480 = vtanh.pop %v468
  %482 = vrot.lane.b32.xlu0 %v480, 16
  %v483 = vpop.permute.xlu0 %482
  %v485 = vmul.f32 %v449, %v483
  %v486 = vtanh.pop %v479
  %488 = vrot.lane.b32.xlu0 %v486, 16
  %v489 = vpop.permute.xlu0 %488
  %v491 = vmul.f32 %v455, %v489
  %493 = vrot.lane.b32.xlu0 %v485, 96
  %v494 = vpop.permute.xlu0 %493
  %s496 = scalar_lea.vmem [#allocation2], 16
  %497 = vst.msk [vmem:[%s496] sm:$0xff] %vm38, %v494
  %499 = vrot.lane.b32.xlu0 %v491, 96
  %v500 = vpop.permute.xlu0 %499
  %s502 = scalar_lea.vmem [#allocation3], 8
  %503 = vst.msk [vmem:[%s502] sm:$0xff] %vm38, %v500
  %v504 = vpack.c.bf16 %v485, %v485
  %s505 = scalar_lea.vmem %s0, 24
  %v506 = vld [vmem:[%s505] sm:$0xff]
  %508 = vrot.lane.b32.xlu0 %v504, 96
  %v509 = vpop.permute.xlu0 %508
  %v511 = vsel %vm38, %v509, 0
  %513 = vmatprep.subr.bf16.mxu0 0
  %514 = vmatpush1.bf16.msra.mxu0 0
  %515 = vmatprep.subr.bf16.mxu0 0
  %516 = vmatpush1.bf16.msra.mxu0 0
  %517 = vmatprep.subr.bf16.mxu0 0
  %518 = vmatpush1.bf16.msra.mxu0 0
  %519 = vmatprep.subr.bf16.mxu0 0
  %520 = vmatpush1.bf16.msra.mxu0 0
  %521 = vmatprep.subr.bf16.mxu0 0
  %522 = vmatpush1.bf16.msra.mxu0 0
  %523 = vmatprep.subr.bf16.mxu0 0
  %524 = vmatpush1.bf16.msra.mxu0 0
  %525 = vmatprep.subr.bf16.mxu0 0
  %526 = vmatpush1.bf16.msra.mxu0 0
  %527 = vmatprep.subr.bf16.mxu0 0
  %528 = vmatpush1.bf16.msra.mxu0 %v36
  %529 = vmatprep.subr.bf16.mxu0 0
  %530 = vmatpush2.bf16.msra.mxu0 0
  %531 = vmatprep.subr.bf16.mxu0 0
  %532 = vmatpush2.bf16.msra.mxu0 0
  %533 = vmatprep.subr.bf16.mxu0 0
  %534 = vmatpush2.bf16.msra.mxu0 0
  %535 = vmatprep.subr.bf16.mxu0 0
  %536 = vmatpush2.bf16.msra.mxu0 0
  %537 = vmatprep.subr.bf16.mxu0 0
  %538 = vmatpush2.bf16.msra.mxu0 0
  %539 = vmatprep.subr.bf16.mxu0 0
  %540 = vmatpush2.bf16.msra.mxu0 0
  %541 = vmatprep.subr.bf16.mxu0 0
  %542 = vmatpush2.bf16.msra.mxu0 0
  %543 = vmatprep.subr.bf16.mxu0 0
  %544 = vmatpush2.bf16.msra.mxu0 0
  %545 = vmatprep.mubr.bf16.mxu0 0
  %546 = vmatmul.mubr.bf16.gmra.mxu0 %v511
  %v547 = vpop.f32.mrf.mxu0
  %v548 = vadd.f32 %v506, %v547
  %v549 = vpop.f32.mrf.mxu0
  %v550 = vpop.f32.mrf.mxu0
  %v551 = vpop.f32.mrf.mxu0
  %552 = vdwg.mxu0
  %v553 = vpack.c.bf16 %v491, %v491
  %s554 = scalar_lea.vmem %s1, 24
  %v555 = vld [vmem:[%s554] sm:$0xff]
  %557 = vrot.lane.b32.xlu0 %v553, 96
  %v558 = vpop.permute.xlu0 %557
  %v560 = vsel %vm38, %v558, 0
  %562 = vmatprep.subr.bf16.mxu0 0
  %563 = vmatpush1.bf16.msra.mxu0 0
  %564 = vmatprep.subr.bf16.mxu0 0
  %565 = vmatpush1.bf16.msra.mxu0 0
  %566 = vmatprep.subr.bf16.mxu0 0
  %567 = vmatpush1.bf16.msra.mxu0 0
  %568 = vmatprep.subr.bf16.mxu0 0
  %569 = vmatpush1.bf16.msra.mxu0 0
  %570 = vmatprep.subr.bf16.mxu0 0
  %571 = vmatpush1.bf16.msra.mxu0 0
  %572 = vmatprep.subr.bf16.mxu0 0
  %573 = vmatpush1.bf16.msra.mxu0 0
  %574 = vmatprep.subr.bf16.mxu0 0
  %575 = vmatpush1.bf16.msra.mxu0 0
  %576 = vmatprep.subr.bf16.mxu0 0
  %577 = vmatpush1.bf16.msra.mxu0 %v87
  %578 = vmatprep.subr.bf16.mxu0 0
  %579 = vmatpush2.bf16.msra.mxu0 0
  %580 = vmatprep.subr.bf16.mxu0 0
  %581 = vmatpush2.bf16.msra.mxu0 0
  %582 = vmatprep.subr.bf16.mxu0 0
  %583 = vmatpush2.bf16.msra.mxu0 0
  %584 = vmatprep.subr.bf16.mxu0 0
  %585 = vmatpush2.bf16.msra.mxu0 0
  %586 = vmatprep.subr.bf16.mxu0 0
  %587 = vmatpush2.bf16.msra.mxu0 0
  %588 = vmatprep.subr.bf16.mxu0 0
  %589 = vmatpush2.bf16.msra.mxu0 0
  %590 = vmatprep.subr.bf16.mxu0 0
  %591 = vmatpush2.bf16.msra.mxu0 0
  %592 = vmatprep.subr.bf16.mxu0 0
  %593 = vmatpush2.bf16.msra.mxu0 0
  %594 = vmatprep.mubr.bf16.mxu0 0
  %595 = vmatmul.mubr.bf16.gmra.mxu0 %v560
  %v596 = vpop.f32.mrf.mxu0
  %v597 = vadd.f32 %v555, %v596
  %v598 = vpop.f32.mrf.mxu0
  %v599 = vpop.f32.mrf.mxu0
  %v600 = vpop.f32.mrf.mxu0
  %601 = vdwg.mxu0
  %v602 = vxor.u32 %v548, 2147483648
  %v603 = vmul.f32 %v602, 1.442695
  %v604 = vpow.pop %v603
  %v605 = vadd.f32 %v604, 1.0
  %v606 = vrcp.pop %v605
  %v607 = vmul.f32 1.0, %v606
  %v608 = vxor.u32 %v597, 2147483648
  %v609 = vmul.f32 %v608, 1.442695
  %v610 = vpow.pop %v609
  %v611 = vadd.f32 %v610, 1.0
  %v612 = vrcp.pop %v611
  %v613 = vmul.f32 1.0, %v612
  %v614 = vtanh.pop %v548
  %v615 = vtanh.pop %v597
  %v616 = vmul.f32 %v607, %v468
  %618 = vrot.lane.b32.xlu0 %v614, 80
  %v619 = vpop.permute.xlu0 %618
  %v621 = vmul.f32 %v607, %v619
  %623 = vrot.lane.b32.xlu0 %v621, 16
  %v624 = vpop.permute.xlu0 %623
  %v626 = vadd.f32 %v616, %v624
  %v627 = vmul.f32 %v613, %v479
  %629 = vrot.lane.b32.xlu0 %v615, 80
  %v630 = vpop.permute.xlu0 %629
  %v632 = vmul.f32 %v613, %v630
  %634 = vrot.lane.b32.xlu0 %v632, 16
  %v635 = vpop.permute.xlu0 %634
  %v637 = vadd.f32 %v627, %v635
  %v638 = vtanh.pop %v626
  %640 = vrot.lane.b32.xlu0 %v638, 16
  %v641 = vpop.permute.xlu0 %640
  %v643 = vmul.f32 %v607, %v641
  %v644 = vtanh.pop %v637
  %646 = vrot.lane.b32.xlu0 %v644, 16
  %v647 = vpop.permute.xlu0 %646
  %v649 = vmul.f32 %v613, %v647
  %651 = vrot.lane.b32.xlu0 %v643, 96
  %v652 = vpop.permute.xlu0 %651
  %s654 = scalar_lea.vmem [#allocation2], 24
  %655 = vst.msk [vmem:[%s654] sm:$0xff] %vm38, %v652
  %657 = vrot.lane.b32.xlu0 %v649, 96
  %v658 = vpop.permute.xlu0 %657
  %660 = vst.msk [vmem:[#allocation3] sm:$0xff] %vm38, %v658
  %v661 = vld [vmem:[#allocation2] sm:$0xff]
  %v662 = vld [vmem:[#allocation2 + $0x8] sm:$0xff]
  %v663 = vld [vmem:[#allocation2 + $0x10] sm:$0xff]
  %v664 = vld [vmem:[#allocation2 + $0x18] sm:$0xff]
  %v665 = vld [vmem:[#allocation3] sm:$0xff]
  %v666 = vld [vmem:[#allocation3 + $0x8] sm:$0xff]
  %v667 = vld [vmem:[#allocation3 + $0x10] sm:$0xff]
  %v668 = vld [vmem:[#allocation3 + $0x18] sm:$0xff]
  %v669 = vadd.f32 %v661, %v665
  %v670 = vadd.f32 %v662, %v666
  %v671 = vadd.f32 %v663, %v667
  %v672 = vadd.f32 %v664, %v668
  %v673 = vtanh.pop %v669
  %v674 = vtanh.pop %v670
  %v675 = vtanh.pop %v671
  %v676 = vtanh.pop %v672
  %v677 = vld [vmem:[%s4] sm:$0x1]
  %v679 = vlaneseq
  %v680 = vshrl.u32 %v679, 7
  %v681 = vsub.s32 0, %v680
  %v682 = vrot.slane %v677, %v681
  %v684 = vmul.f32 %v673, %v682
  %v685 = vmul.f32 %v674, %v682
  %v686 = vmul.f32 %v675, %v682
  %v687 = vmul.f32 %v676, %v682
  %v688 = vsel %vm38, %v684, 0.0
  %689 = vadd.xlane.f32.xlu0 %v688
  %v690 = vpop.xlane.xlu0 %689
  %v691 = vsel %vm38, %v685, 0.0
  %692 = vadd.xlane.f32.xlu0 %v691
  %v693 = vpop.xlane.xlu0 %692
  %v694 = vsel %vm38, %v686, 0.0
  %695 = vadd.xlane.f32.xlu0 %v694
  %v696 = vpop.xlane.xlu0 %695
  %v697 = vsel %vm38, %v687, 0.0
  %698 = vadd.xlane.f32.xlu0 %v697
  %v699 = vpop.xlane.xlu0 %698
  %v700 = vmax.f32 %v690, %v693
  %v701 = vmax.f32 %v696, %v699
  %v702 = vmax.f32 %v700, %v701
  %v703 = vsub.f32 %v690, %v702
  %v704 = vsub.f32 %v693, %v702
  %v705 = vsub.f32 %v696, %v702
  %v706 = vsub.f32 %v699, %v702
  %v707 = vmul.f32 %v703, 1.442695
  %v708 = vpow.pop %v707
  %v709 = vmul.f32 %v704, 1.442695
  %v710 = vpow.pop %v709
  %v711 = vmul.f32 %v705, 1.442695
  %v712 = vpow.pop %v711
  %v713 = vmul.f32 %v706, 1.442695
  %v714 = vpow.pop %v713
  %v715 = vadd.f32 %v708, %v710
  %v716 = vadd.f32 %v715, %v712
  %v717 = vadd.f32 %v716, %v714
  %v718 = vrcp.pop %v717
  %v719 = vmul.f32 %v708, %v718
  %v720 = vmul.f32 %v710, %v718
  %v721 = vmul.f32 %v712, %v718
  %v722 = vmul.f32 %v714, %v718
  %v723 = vmul.f32 %v669, %v719
  %v724 = vmul.f32 %v670, %v720
  %v725 = vmul.f32 %v671, %v721
  %v726 = vmul.f32 %v672, %v722
  %v727 = vsel %vm38, %v723, 0.0
  %v728 = vsel %vm38, %v724, 0.0
  %v729 = vadd.f32 %v727, %v728
  %v730 = vsel %vm38, %v725, 0.0
  %v731 = vadd.f32 %v729, %v730
  %v732 = vsel %vm38, %v726, 0.0
  %v733 = vadd.f32 %v731, %v732
  %v734 = vtanh.pop %v733
  %v735 = vpack.c.bf16 %v734, %v734
  %v736 = vld [vmem:[%s5] sm:$0xf]
  %v737 = vld [vmem:[%s5 + $0x4] sm:$0xf]
  %v738 = vld [vmem:[%s6] sm:$0x1]
  %v740 = vlaneseq
  %v741 = vshrl.u32 %v740, 7
  %v742 = vsub.s32 0, %v741
  %v743 = vrot.slane %v738, %v742
  %v747 = vunpack.c.l.b16 %v736
  %v748 = vunpack.c.l.b16 %v737
  %v749 = vpack.c.b16 %v748, %v747
  %v752 = vsel %vm38, %v735, 0
  %754 = vmatprep.subr.bf16.mxu0 0
  %755 = vmatpush1.bf16.msra.mxu0 0
  %756 = vmatprep.subr.bf16.mxu0 0
  %757 = vmatpush1.bf16.msra.mxu0 0
  %758 = vmatprep.subr.bf16.mxu0 0
  %759 = vmatpush1.bf16.msra.mxu0 0
  %760 = vmatprep.subr.bf16.mxu0 0
  %761 = vmatpush1.bf16.msra.mxu0 0
  %762 = vmatprep.subr.bf16.mxu0 0
  %763 = vmatpush1.bf16.msra.mxu0 0
  %764 = vmatprep.subr.bf16.mxu0 0
  %765 = vmatpush1.bf16.msra.mxu0 0
  %766 = vmatprep.subr.bf16.mxu0 0
  %767 = vmatpush1.bf16.msra.mxu0 0
  %768 = vmatprep.subr.bf16.mxu0 0
  %769 = vmatpush1.bf16.msra.mxu0 %v749
  %770 = vmatprep.subr.bf16.mxu0 0
  %771 = vmatpush2.bf16.msra.mxu0 0
  %772 = vmatprep.subr.bf16.mxu0 0
  %773 = vmatpush2.bf16.msra.mxu0 0
  %774 = vmatprep.subr.bf16.mxu0 0
  %775 = vmatpush2.bf16.msra.mxu0 0
  %776 = vmatprep.subr.bf16.mxu0 0
  %777 = vmatpush2.bf16.msra.mxu0 0
  %778 = vmatprep.subr.bf16.mxu0 0
  %779 = vmatpush2.bf16.msra.mxu0 0
  %780 = vmatprep.subr.bf16.mxu0 0
  %781 = vmatpush2.bf16.msra.mxu0 0
  %782 = vmatprep.subr.bf16.mxu0 0
  %783 = vmatpush2.bf16.msra.mxu0 0
  %784 = vmatprep.subr.bf16.mxu0 0
  %785 = vmatpush2.bf16.msra.mxu0 0
  %786 = vmatprep.mubr.bf16.mxu0 0
  %787 = vmatmul.mubr.bf16.gmra.mxu0 %v752
  %v788 = vpop.f32.mrf.mxu0
  %v789 = vadd.f32 %v743, %v788
  %v790 = vpop.f32.mrf.mxu0
  %v791 = vpop.f32.mrf.mxu0
  %v792 = vpop.f32.mrf.mxu0
  %793 = vdwg.mxu0
  %794 = vst [vmem:[%s7] sm:$0xff] %v789
  // Predicated region
  $region30: #{att_bilstm_forward.1} parent=0 // pred_check
    _
  $region31: #{att_bilstm_forward.1} parent=0 // pred_check_branch
    %796 = sbr.rel (0) target = $region33
  $region32: #{att_bilstm_forward.1} parent=0 // pred_region
    _
  $region33: #{att_bilstm_forward.1} parent=0 // pred_fallthru
    _
  // Predicated region
  $region34: #{att_bilstm_forward.1} parent=0 // pred_check
    _
  $region35: #{att_bilstm_forward.1} parent=0 // pred_check_branch
    %798 = sbr.rel (0) target = $region37
  $region36: #{att_bilstm_forward.1} parent=0 // pred_region
    _
  $region37: #{att_bilstm_forward.1} parent=0 // pred_fallthru
    _

</llo_original>
